<compile_context>
chip_gen: v7x
topology: tpu7x:2x2x1
jax: 0.10.0
libtpu: 0.0.40
codegen_flags: <defaults>
</compile_context>

<pallas_src>
import jax
import jax.numpy as jnp
from jax.experimental import pallas as pl
from jax.experimental.pallas import tpu as pltpu

NEG_SLOPE = 0.01   # PyTorch LeakyReLU default


def _leaky_relu(x):
    return jnp.where(x > 0, x, NEG_SLOPE * x)


def _round_up(x, m):
    return ((x + m - 1) // m) * m


def _choose_batch_tile(batch, sublane, max_tile, vmem_budget_bytes, row_bytes):
    """Largest sublane-multiple tile covering the batch, capped by max_tile
    and by a per-tile VMEM budget (double-buffered x/out + f32 activations)."""
    tile = _round_up(min(max(batch, 1), max_tile), sublane)
    vmem_cap = max(sublane,
                   ((vmem_budget_bytes // max(row_bytes, 1)) // sublane) * sublane)
    return max(sublane, min(tile, vmem_cap))


def mlp_kernel(x_ref, w1_ref, b1_ref, w2_ref, b2_ref, w3_ref, b3_ref, o_ref):
    """Entire 3-layer MLP fused; one invocation per batch tile.

    MXU operands are cast to the weight dtype (f32 or bf16); bias add and
    LeakyReLU run in f32; accumulation is f32 via preferred_element_type.
    """
    mxu_dtype = w1_ref.dtype
    x = x_ref[...]
    h = jnp.dot(x.astype(mxu_dtype), w1_ref[...],
                preferred_element_type=jnp.float32) + b1_ref[...]
    h = _leaky_relu(h)
    h = jnp.dot(h.astype(mxu_dtype), w2_ref[...],
                preferred_element_type=jnp.float32) + b2_ref[...]
    h = _leaky_relu(h)
    out = jnp.dot(h.astype(mxu_dtype), w3_ref[...],
                  preferred_element_type=jnp.float32) + b3_ref[...]
    o_ref[...] = out.astype(o_ref.dtype)


def prepare_mxu_params(params, mxu_dtype=jnp.float32):
    """One-time weight preparation (hoisted out of the per-call path).

    Only the matmul weights are cast; biases stay f32 so bias add / LeakyReLU
    remain on the f32 VPU path (important on v5e's f32-only VPU).
    """
    out = dict(params)
    if mxu_dtype != jnp.float32:
        for k in ("w1", "w2", "w3"):
            out[k] = params[k].astype(mxu_dtype)
    return out


def discriminator_forward(x, params, *, max_batch_tile=2048,
                          vmem_budget_bytes=24 * 1024 * 1024):
    """x: [B, input_dim] float32. params: dict of [in, out] weights, [1, out] biases.

    If the weights were pre-cast to bf16 (prepare_mxu_params), x is also fed
    as bf16 to halve the dominant HBM read stream (the cast is a cheap XLA op
    that fuses into x's producer in a real pipeline).  Output stays f32.
    """
    w1, b1, w2, b2, w3, b3 = (params["w1"], params["b1"], params["w2"],
                              params["b2"], params["w3"], params["b3"])
    B, input_dim = x.shape
    latent_dim = w1.shape[1]
    latent_dim2 = w2.shape[1]
    output_dim = w3.shape[1]

    mxu_dtype = w1.dtype
    if mxu_dtype == jnp.bfloat16 and x.dtype != jnp.bfloat16:
        x = x.astype(jnp.bfloat16)

    # bf16 packs 16 rows per sublane pair; f32 packs 8.
    sublane = 16 if x.dtype == jnp.bfloat16 else 8

    # Per-row VMEM estimate: double-buffered x tile + double-buffered out tile
    # + f32 intermediate activations (conservative: both layers live at once).
    row_bytes = (2 * input_dim * x.dtype.itemsize
                 + 2 * output_dim * 4
                 + (latent_dim + latent_dim2) * 4)
    batch_tile = _choose_batch_tile(B, sublane, max_batch_tile,
                                    vmem_budget_bytes, row_bytes)
    n_tiles = pl.cdiv(B, batch_tile)   # ragged last tile handled by Pallas clipping

    # Weights/biases: full blocks with constant index_map (DMA'd once, resident).
    full = lambda shape: pl.BlockSpec(shape, lambda i: (0, 0))

    flops = 2 * B * (input_dim * latent_dim
                     + latent_dim * latent_dim2
                     + latent_dim2 * output_dim)
    bytes_accessed = (B * input_dim * x.dtype.itemsize
                      + B * output_dim * 4
                      + sum(int(p.size) * p.dtype.itemsize
                            for p in (w1, b1, w2, b2, w3, b3)))

    out = pl.pallas_call(
        mlp_kernel,
        out_shape=jax.ShapeDtypeStruct((B, output_dim), jnp.float32),
        grid_spec=pl.GridSpec(
            grid=(n_tiles,),
            in_specs=[
                pl.BlockSpec((batch_tile, input_dim), lambda i: (i, 0)),  # x tile
                full((input_dim, latent_dim)),      # w1
                full((1, latent_dim)),              # b1
                full((latent_dim, latent_dim2)),    # w2
                full((1, latent_dim2)),             # b2
                full((latent_dim2, output_dim)),    # w3
                full((1, output_dim)),              # b3
            ],
            # Output block's last dim equals the full array dim -> no 16x
            # zero-pad writeback; masked vst is fine in this mem-bound regime.
            out_specs=pl.BlockSpec((batch_tile, output_dim), lambda i: (i, 0)),
        ),
        compiler_params=pltpu.CompilerParams(
            # NOTE: on v7x, if xprof shows one TensorCore idle at large B,
            # switch to pltpu.CORE_PARALLEL / pl.core_map for explicit 2-way split.
            dimension_semantics=("parallel",),
            vmem_limit_bytes=32 * 1024 * 1024,
        ),
        cost_estimate=pl.CostEstimate(flops=flops, transcendentals=0,
                                      bytes_accessed=bytes_accessed),
    )(x, w1, b1, w2, b2, w3, b3)

    return out


def init_params(key, input_dim, latent_dim, latent_dim2, output_dim):
    """Deterministic synthetic init (PyTorch-like uniform fan-in scaling)."""
    ks = jax.random.split(key, 6)

    def lin(kw, kb, fan_in, fan_out):
        bound = 1.0 / jnp.sqrt(fan_in)
        # stored already transposed: [in, out]
        w = jax.random.uniform(kw, (fan_in, fan_out), jnp.float32, -bound, bound)
        b = jax.random.uniform(kb, (1, fan_out), jnp.float32, -bound, bound)
        return w, b

    w1, b1 = lin(ks[0], ks[1], input_dim, latent_dim)
    w2, b2 = lin(ks[2], ks[3], latent_dim, latent_dim2)
    w3, b3 = lin(ks[4], ks[5], latent_dim2, output_dim)
    return {"w1": w1, "b1": b1, "w2": w2, "b2": b2, "w3": w3, "b3": b3}


def reference_forward(x, p):
    h = _leaky_relu(x @ p["w1"] + p["b1"])
    h = _leaky_relu(h @ p["w2"] + p["b2"])
    return h @ p["w3"] + p["b3"]


if __name__ == "__main__":
    input_dim, latent_dim, latent_dim2, output_dim = 32, 64, 32, 8
    batch = 16

    key = jax.random.PRNGKey(0)
    kx, kp = jax.random.split(key)
    x = jax.random.normal(kx, (batch, input_dim), jnp.float32)
    params = init_params(kp, input_dim, latent_dim, latent_dim2, output_dim)

    ref = reference_forward(x, params)

    # f32 path (bit-compatible with the PyTorch-style f32 reference).
    out = jax.block_until_ready(discriminator_forward(x, params))
    assert out.shape == (batch, output_dim)
    assert jnp.allclose(out, ref, atol=1e-5, rtol=1e-5), "f32 mismatch vs reference"

    # bf16 MXU-operand path (recommended on all generations, incl. v5e).
    # Weights pre-cast ONCE here; only x is cast per call.  Activations are
    # rounded to bf16 between layers, hence the looser tolerance.
    params_bf16 = prepare_mxu_params(params, jnp.bfloat16)
    out_bf16 = jax.block_until_ready(discriminator_forward(x, params_bf16))
    assert out_bf16.shape == (batch, output_dim)
    assert jnp.allclose(out_bf16, ref, atol=1e-1, rtol=1e-1), "bf16 mismatch vs reference"

    print("KERNEL_OK")
</pallas_src>

<mosaic_0001>
module attributes {stable_mosaic.version = 11 : i64} {
  func.func @mlp_kernel(%arg0: i32, %arg1: memref<16x32xf32, #tpu.memory_space<vmem>>, %arg2: memref<32x64xf32, #tpu.memory_space<vmem>>, %arg3: memref<1x64xf32, #tpu.memory_space<vmem>>, %arg4: memref<64x32xf32, #tpu.memory_space<vmem>>, %arg5: memref<1x32xf32, #tpu.memory_space<vmem>>, %arg6: memref<32x8xf32, #tpu.memory_space<vmem>>, %arg7: memref<1x8xf32, #tpu.memory_space<vmem>>, %arg8: memref<16x8xf32, #tpu.memory_space<vmem>>) attributes {dimension_semantics = [#tpu.dimension_semantics<parallel>], iteration_bounds = array<i64: 1>, scalar_prefetch = 0 : i64, scratch_operands = 0 : i64, tpu.core_type = #tpu.core_type<tc>, window_params = [{transform_indices = @transform_0, window_bounds = array<i64: 16, 32>}, {pipeline_mode = #tpu.pipeline_mode<synchronous>, transform_indices = @transform_1, window_bounds = array<i64: 32, 64>}, {pipeline_mode = #tpu.pipeline_mode<synchronous>, transform_indices = @transform_2, window_bounds = array<i64: 1, 64>}, {pipeline_mode = #tpu.pipeline_mode<synchronous>, transform_indices = @transform_3, window_bounds = array<i64: 64, 32>}, {pipeline_mode = #tpu.pipeline_mode<synchronous>, transform_indices = @transform_4, window_bounds = array<i64: 1, 32>}, {pipeline_mode = #tpu.pipeline_mode<synchronous>, transform_indices = @transform_5, window_bounds = array<i64: 32, 8>}, {pipeline_mode = #tpu.pipeline_mode<synchronous>, transform_indices = @transform_6, window_bounds = array<i64: 1, 8>}, {transform_indices = @transform_7, window_bounds = array<i64: 16, 8>}]} {
    %c0 = arith.constant 0 : index
    %c0_0 = arith.constant 0 : index
    %0 = vector.load %arg1[%c0, %c0_0] : memref<16x32xf32, #tpu.memory_space<vmem>>, vector<16x32xf32>
    %c0_1 = arith.constant 0 : index
    %c0_2 = arith.constant 0 : index
    %1 = vector.load %arg2[%c0_1, %c0_2] : memref<32x64xf32, #tpu.memory_space<vmem>>, vector<32x64xf32>
    %cst = arith.constant dense<0.000000e+00> : vector<16x64xf32>
    %2 = tpu.matmul %0, %1, %cst {dimension_numbers = #tpu.dot_dimension_numbers<[1], [0], [0], [1], [0, 0, 1, 1], [], []>} : vector<16x32xf32>, vector<32x64xf32>, vector<16x64xf32> -> vector<16x64xf32>
    %c0_3 = arith.constant 0 : index
    %c0_4 = arith.constant 0 : index
    %3 = vector.load %arg3[%c0_3, %c0_4] : memref<1x64xf32, #tpu.memory_space<vmem>>, vector<1x64xf32>
    %4 = vector.broadcast %3 : vector<1x64xf32> to vector<16x64xf32>
    %5 = arith.addf %2, %4 : vector<16x64xf32>
    %cst_5 = arith.constant 0.000000e+00 : f32
    %6 = vector.broadcast %cst_5 : f32 to vector<16x64xf32>
    %7 = arith.cmpf ogt, %5, %6 : vector<16x64xf32>
    %cst_6 = arith.constant 0.00999999977 : f32
    %8 = vector.broadcast %cst_6 : f32 to vector<16x64xf32>
    %9 = arith.mulf %8, %5 : vector<16x64xf32>
    %10 = arith.select %7, %5, %9 : vector<16x64xi1>, vector<16x64xf32>
    %c0_7 = arith.constant 0 : index
    %c0_8 = arith.constant 0 : index
    %11 = vector.load %arg4[%c0_7, %c0_8] : memref<64x32xf32, #tpu.memory_space<vmem>>, vector<64x32xf32>
    %cst_9 = arith.constant dense<0.000000e+00> : vector<16x32xf32>
    %12 = tpu.matmul %10, %11, %cst_9 {dimension_numbers = #tpu.dot_dimension_numbers<[1], [0], [0], [1], [0, 0, 1, 1], [], []>} : vector<16x64xf32>, vector<64x32xf32>, vector<16x32xf32> -> vector<16x32xf32>
    %c0_10 = arith.constant 0 : index
    %c0_11 = arith.constant 0 : index
    %13 = vector.load %arg5[%c0_10, %c0_11] : memref<1x32xf32, #tpu.memory_space<vmem>>, vector<1x32xf32>
    %14 = vector.broadcast %13 : vector<1x32xf32> to vector<16x32xf32>
    %15 = arith.addf %12, %14 : vector<16x32xf32>
    %cst_12 = arith.constant 0.000000e+00 : f32
    %16 = vector.broadcast %cst_12 : f32 to vector<16x32xf32>
    %17 = arith.cmpf ogt, %15, %16 : vector<16x32xf32>
    %cst_13 = arith.constant 0.00999999977 : f32
    %18 = vector.broadcast %cst_13 : f32 to vector<16x32xf32>
    %19 = arith.mulf %18, %15 : vector<16x32xf32>
    %20 = arith.select %17, %15, %19 : vector<16x32xi1>, vector<16x32xf32>
    %c0_14 = arith.constant 0 : index
    %c0_15 = arith.constant 0 : index
    %21 = vector.load %arg6[%c0_14, %c0_15] : memref<32x8xf32, #tpu.memory_space<vmem>>, vector<32x8xf32>
    %cst_16 = arith.constant dense<0.000000e+00> : vector<16x8xf32>
    %22 = tpu.matmul %20, %21, %cst_16 {dimension_numbers = #tpu.dot_dimension_numbers<[1], [0], [0], [1], [0, 0, 1, 1], [], []>} : vector<16x32xf32>, vector<32x8xf32>, vector<16x8xf32> -> vector<16x8xf32>
    %c0_17 = arith.constant 0 : index
    %c0_18 = arith.constant 0 : index
    %23 = vector.load %arg7[%c0_17, %c0_18] : memref<1x8xf32, #tpu.memory_space<vmem>>, vector<1x8xf32>
    %24 = vector.broadcast %23 : vector<1x8xf32> to vector<16x8xf32>
    %25 = arith.addf %22, %24 : vector<16x8xf32>
    %c0_19 = arith.constant 0 : index
    %c0_20 = arith.constant 0 : index
    %26 = vector.load %arg8[%c0_19, %c0_20] : memref<16x8xf32, #tpu.memory_space<vmem>>, vector<16x8xf32>
    tpu.vector_store %arg8[%c0_19, %c0_20], %25 {strides = array<i32>} : memref<16x8xf32, #tpu.memory_space<vmem>>, vector<16x8xf32>,
    return
  }
  func.func @transform_0(%arg0: i32) -> (i32, i32) {
    %c0_i32 = arith.constant 0 : i32
    %c0_i32_0 = arith.constant 0 : i32
    return %arg0, %c0_i32 : i32, i32
  }
  func.func @transform_1(%arg0: i32) -> (i32, i32) {
    %c0_i32 = arith.constant 0 : i32
    %c0_i32_0 = arith.constant 0 : i32
    %c0_i32_1 = arith.constant 0 : i32
    return %c0_i32, %c0_i32_0 : i32, i32
  }
  func.func @transform_2(%arg0: i32) -> (i32, i32) {
    %c0_i32 = arith.constant 0 : i32
    %c0_i32_0 = arith.constant 0 : i32
    %c0_i32_1 = arith.constant 0 : i32
    return %c0_i32, %c0_i32_0 : i32, i32
  }
  func.func @transform_3(%arg0: i32) -> (i32, i32) {
    %c0_i32 = arith.constant 0 : i32
    %c0_i32_0 = arith.constant 0 : i32
    %c0_i32_1 = arith.constant 0 : i32
    return %c0_i32, %c0_i32_0 : i32, i32
  }
  func.func @transform_4(%arg0: i32) -> (i32, i32) {
    %c0_i32 = arith.constant 0 : i32
    %c0_i32_0 = arith.constant 0 : i32
    %c0_i32_1 = arith.constant 0 : i32
    return %c0_i32, %c0_i32_0 : i32, i32
  }
  func.func @transform_5(%arg0: i32) -> (i32, i32) {
    %c0_i32 = arith.constant 0 : i32
    %c0_i32_0 = arith.constant 0 : i32
    %c0_i32_1 = arith.constant 0 : i32
    return %c0_i32, %c0_i32_0 : i32, i32
  }
  func.func @transform_6(%arg0: i32) -> (i32, i32) {
    %c0_i32 = arith.constant 0 : i32
    %c0_i32_0 = arith.constant 0 : i32
    %c0_i32_1 = arith.constant 0 : i32
    return %c0_i32, %c0_i32_0 : i32, i32
  }
  func.func @transform_7(%arg0: i32) -> (i32, i32) {
    %c0_i32 = arith.constant 0 : i32
    %c0_i32_0 = arith.constant 0 : i32
    return %arg0, %c0_i32 : i32, i32
  }
}

</mosaic_0001>

<llo_original>
// kernel: tpu_custom_call.1
$region0: #{tpu_custom_call.1}
  #allocation0 [shape = 'u32[]', space=smem, size = 0x4, offset = 0x4, fixed_abs, tag = 'smem constant byte address 0x4 - core index']
  #allocation1 [shape = 'u32[144,128]{1,0:T(1,128)}', space=vmem, size = 0x12000, scoped, tag = 'internal scratch']
  %s0 = inlined_call_operand.vmem [shape: f32[16,32], index: 0, kind: input, shape index: {}]
  %s1 = inlined_call_operand.vmem [shape: f32[32,64], index: 1, kind: input, shape index: {}]
  %s2 = inlined_call_operand.vmem [shape: f32[1,64], index: 2, kind: input, shape index: {}]
  %s3 = inlined_call_operand.vmem [shape: f32[64,32], index: 3, kind: input, shape index: {}]
  %s4 = inlined_call_operand.vmem [shape: f32[1,32], index: 4, kind: input, shape index: {}]
  %s5 = inlined_call_operand.vmem [shape: f32[32,8], index: 5, kind: input, shape index: {}]
  %s6 = inlined_call_operand.vmem [shape: f32[1,8], index: 6, kind: input, shape index: {}]
  %s7 = inlined_call_operand.vmem [shape: f32[16,8], index: 7, kind: output, shape index: {}]
  %s8 = sld [smem:[#allocation0]]
  $region38: #{tpu_custom_call.1} parent=0
    _
  %s10 = ssub.s32 1, %s8
  %s11 = scalar_select 0, %s10, %s8
  // Predicated region
  $region2: #{tpu_custom_call.1} parent=0 // pred_check
    _
  $region3: #{tpu_custom_call.1} parent=0 // pred_check_branch
    %13 = sbr.rel (0) target = $region5
  $region4: #{tpu_custom_call.1} parent=0 // pred_region
    _
  $region5: #{tpu_custom_call.1} parent=0 // pred_fallthru
    _
  // Predicated region
  $region6: #{tpu_custom_call.1} parent=0 // pred_check
    _
  $region7: #{tpu_custom_call.1} parent=0 // pred_check_branch
    %15 = sbr.rel (0) target = $region9
  $region8: #{tpu_custom_call.1} parent=0 // pred_region
    _
  $region9: #{tpu_custom_call.1} parent=0 // pred_fallthru
    _
  // Predicated region
  $region10: #{tpu_custom_call.1} parent=0 // pred_check
    _
  $region11: #{tpu_custom_call.1} parent=0 // pred_check_branch
    %17 = sbr.rel (0) target = $region13
  $region12: #{tpu_custom_call.1} parent=0 // pred_region
    _
  $region13: #{tpu_custom_call.1} parent=0 // pred_fallthru
    _
  // Predicated region
  $region14: #{tpu_custom_call.1} parent=0 // pred_check
    _
  $region15: #{tpu_custom_call.1} parent=0 // pred_check_branch
    %19 = sbr.rel (0) target = $region17
  $region16: #{tpu_custom_call.1} parent=0 // pred_region
    _
  $region17: #{tpu_custom_call.1} parent=0 // pred_fallthru
    _
  // Predicated region
  $region18: #{tpu_custom_call.1} parent=0 // pred_check
    _
  $region19: #{tpu_custom_call.1} parent=0 // pred_check_branch
    %21 = sbr.rel (0) target = $region21
  $region20: #{tpu_custom_call.1} parent=0 // pred_region
    _
  $region21: #{tpu_custom_call.1} parent=0 // pred_fallthru
    _
  // Predicated region
  $region22: #{tpu_custom_call.1} parent=0 // pred_check
    _
  $region23: #{tpu_custom_call.1} parent=0 // pred_check_branch
    %23 = sbr.rel (0) target = $region25
  $region24: #{tpu_custom_call.1} parent=0 // pred_region
    _
  $region25: #{tpu_custom_call.1} parent=0 // pred_fallthru
    _
  // Predicated region
  $region26: #{tpu_custom_call.1} parent=0 // pred_check
    _
  $region27: #{tpu_custom_call.1} parent=0 // pred_check_branch
    %25 = sbr.rel (0) target = $region29
  $region28: #{tpu_custom_call.1} parent=0 // pred_region
    _
  $region29: #{tpu_custom_call.1} parent=0 // pred_fallthru
    _
  %v26 = vld [vmem:[%s0] sm:$0xff]
  %v27 = vld [vmem:[%s0 + $0x8] sm:$0xff]
  %v28 = vld [vmem:[%s1] sm:$0xff]
  %v29 = vld [vmem:[%s1 + $0x8] sm:$0xff]
  %v30 = vld [vmem:[%s1 + $0x10] sm:$0xff]
  %v31 = vld [vmem:[%s1 + $0x18] sm:$0xff]
  %v32 = vld [vmem:[%s2] sm:$0x1]
  %v34 = vlaneseq
  %v35 = vshrl.u32 %v34, 7
  %v36 = vsub.s32 0, %v35
  %v37 = vrot.slane %v32, %v36
  %vm39 = vcmask 261120
  %v41 = vsel %vm39, %v26, 0
  %v44 = vsel %vm39, %v27, 0
  %46 = vmatprep.subr.mxu0 0.0
  %47 = vmatpush1.msra.mxu0 %v28
  %48 = vmatprep.subr.mxu0 0.0
  %49 = vmatpush1.msra.mxu0 %v29
  %50 = vmatprep.subr.mxu0 0.0
  %51 = vmatpush1.msra.mxu0 %v30
  %52 = vmatprep.subr.mxu0 0.0
  %53 = vmatpush1.msra.mxu0 %v31
  %54 = vmatprep.subr.mxu0 0.0
  %55 = vmatpush1.msra.mxu0 0.0
  %56 = vmatprep.subr.mxu0 0.0
  %57 = vmatpush1.msra.mxu0 0.0
  %58 = vmatprep.subr.mxu0 0.0
  %59 = vmatpush1.msra.mxu0 0.0
  %60 = vmatprep.subr.mxu0 0.0
  %61 = vmatpush1.msra.mxu0 0.0
  %62 = vmatprep.subr.mxu0 0.0
  %63 = vmatpush1.msra.mxu0 0.0
  %64 = vmatprep.subr.mxu0 0.0
  %65 = vmatpush1.msra.mxu0 0.0
  %66 = vmatprep.subr.mxu0 0.0
  %67 = vmatpush1.msra.mxu0 0.0
  %68 = vmatprep.subr.mxu0 0.0
  %69 = vmatpush1.msra.mxu0 0.0
  %70 = vmatprep.subr.mxu0 0.0
  %71 = vmatpush1.msra.mxu0 0.0
  %72 = vmatprep.subr.mxu0 0.0
  %73 = vmatpush1.msra.mxu0 0.0
  %74 = vmatprep.subr.mxu0 0.0
  %75 = vmatpush1.msra.mxu0 0.0
  %76 = vmatprep.subr.mxu0 0.0
  %77 = vmatpush1.msra.mxu0 0.0
  %78 = vmatprep.subr.mxu0 0.0
  %79 = vmatpush1.msra.mxu0 0.0
  %80 = vmatprep.subr.mxu0 0.0
  %81 = vmatpush1.msra.mxu0 0.0
  %82 = vmatprep.subr.mxu0 0.0
  %83 = vmatpush1.msra.mxu0 0.0
  %84 = vmatprep.subr.mxu0 0.0
  %85 = vmatpush1.msra.mxu0 0.0
  %86 = vmatprep.subr.mxu0 0.0
  %87 = vmatpush1.msra.mxu0 0.0
  %88 = vmatprep.subr.mxu0 0.0
  %89 = vmatpush1.msra.mxu0 0.0
  %90 = vmatprep.subr.mxu0 0.0
  %91 = vmatpush1.msra.mxu0 0.0
  %92 = vmatprep.subr.mxu0 0.0
  %93 = vmatpush1.msra.mxu0 0.0
  %94 = vmatprep.subr.mxu0 0.0
  %95 = vmatpush1.msra.mxu0 0.0
  %96 = vmatprep.subr.mxu0 0.0
  %97 = vmatpush1.msra.mxu0 0.0
  %98 = vmatprep.subr.mxu0 0.0
  %99 = vmatpush1.msra.mxu0 0.0
  %100 = vmatprep.subr.mxu0 0.0
  %101 = vmatpush1.msra.mxu0 0.0
  %102 = vmatprep.subr.mxu0 0.0
  %103 = vmatpush1.msra.mxu0 0.0
  %104 = vmatprep.subr.mxu0 0.0
  %105 = vmatpush1.msra.mxu0 0.0
  %106 = vmatprep.subr.mxu0 0.0
  %107 = vmatpush1.msra.mxu0 0.0
  %108 = vmatprep.subr.mxu0 0.0
  %109 = vmatpush1.msra.mxu0 0.0
  %110 = vmatprep.mubr.f32.mxu0 0.0
  %111 = vmatmul.mubr.f32.gmra.mrb[0].mxu0 %v41
  %v112 = vpop.f32.mrb[0].mxu0
  %v113 = vadd.f32 %v37, %v112
  %v114 = vpop.f32.mrb[0].mxu0
  %115 = vmatprep.mubr.f32.mxu0 0.0
  %116 = vmatmul.mubr.f32.gmra.mrb[0].mxu0 %v44
  %v117 = vpop.f32.mrb[0].mxu0
  %v118 = vadd.f32 %v37, %v117
  %v119 = vpop.f32.mrb[0].mxu0
  %120 = vdwg.mxu0
  %vm121 = vcmp.gt.f32.partialorder %v113, 0.0
  %vm122 = vcmp.gt.f32.partialorder %v118, 0.0
  %v123 = vmul.f32 %v113, 0.01
  %v124 = vmul.f32 %v118, 0.01
  %v125 = vsel %vm121, %v113, %v123
  %v126 = vsel %vm122, %v118, %v124
  %v127 = vld [vmem:[%s3] sm:$0xff]
  %v128 = vld [vmem:[%s3 + $0x8] sm:$0xff]
  %v129 = vld [vmem:[%s3 + $0x10] sm:$0xff]
  %v130 = vld [vmem:[%s3 + $0x18] sm:$0xff]
  %v131 = vld [vmem:[%s3 + $0x20] sm:$0xff]
  %v132 = vld [vmem:[%s3 + $0x28] sm:$0xff]
  %v133 = vld [vmem:[%s3 + $0x30] sm:$0xff]
  %v134 = vld [vmem:[%s3 + $0x38] sm:$0xff]
  %v135 = vld [vmem:[%s4] sm:$0x1]
  %v137 = vlaneseq
  %v138 = vshrl.u32 %v137, 7
  %v139 = vsub.s32 0, %v138
  %v140 = vrot.slane %v135, %v139
  %vm142 = vcmask 523264
  %v144 = vsel %vm142, %v125, 0
  %v147 = vsel %vm142, %v126, 0
  %149 = vmatprep.subr.mxu0 0.0
  %150 = vmatpush1.msra.mxu0 %v127
  %151 = vmatprep.subr.mxu0 0.0
  %152 = vmatpush1.msra.mxu0 %v128
  %153 = vmatprep.subr.mxu0 0.0
  %154 = vmatpush1.msra.mxu0 %v129
  %155 = vmatprep.subr.mxu0 0.0
  %156 = vmatpush1.msra.mxu0 %v130
  %157 = vmatprep.subr.mxu0 0.0
  %158 = vmatpush1.msra.mxu0 %v131
  %159 = vmatprep.subr.mxu0 0.0
  %160 = vmatpush1.msra.mxu0 %v132
  %161 = vmatprep.subr.mxu0 0.0
  %162 = vmatpush1.msra.mxu0 %v133
  %163 = vmatprep.subr.mxu0 0.0
  %164 = vmatpush1.msra.mxu0 %v134
  %165 = vmatprep.subr.mxu0 0.0
  %166 = vmatpush1.msra.mxu0 0.0
  %167 = vmatprep.subr.mxu0 0.0
  %168 = vmatpush1.msra.mxu0 0.0
  %169 = vmatprep.subr.mxu0 0.0
  %170 = vmatpush1.msra.mxu0 0.0
  %171 = vmatprep.subr.mxu0 0.0
  %172 = vmatpush1.msra.mxu0 0.0
  %173 = vmatprep.subr.mxu0 0.0
  %174 = vmatpush1.msra.mxu0 0.0
  %175 = vmatprep.subr.mxu0 0.0
  %176 = vmatpush1.msra.mxu0 0.0
  %177 = vmatprep.subr.mxu0 0.0
  %178 = vmatpush1.msra.mxu0 0.0
  %179 = vmatprep.subr.mxu0 0.0
  %180 = vmatpush1.msra.mxu0 0.0
  %181 = vmatprep.subr.mxu0 0.0
  %182 = vmatpush1.msra.mxu0 0.0
  %183 = vmatprep.subr.mxu0 0.0
  %184 = vmatpush1.msra.mxu0 0.0
  %185 = vmatprep.subr.mxu0 0.0
  %186 = vmatpush1.msra.mxu0 0.0
  %187 = vmatprep.subr.mxu0 0.0
  %188 = vmatpush1.msra.mxu0 0.0
  %189 = vmatprep.subr.mxu0 0.0
  %190 = vmatpush1.msra.mxu0 0.0
  %191 = vmatprep.subr.mxu0 0.0
  %192 = vmatpush1.msra.mxu0 0.0
  %193 = vmatprep.subr.mxu0 0.0
  %194 = vmatpush1.msra.mxu0 0.0
  %195 = vmatprep.subr.mxu0 0.0
  %196 = vmatpush1.msra.mxu0 0.0
  %197 = vmatprep.subr.mxu0 0.0
  %198 = vmatpush1.msra.mxu0 0.0
  %199 = vmatprep.subr.mxu0 0.0
  %200 = vmatpush1.msra.mxu0 0.0
  %201 = vmatprep.subr.mxu0 0.0
  %202 = vmatpush1.msra.mxu0 0.0
  %203 = vmatprep.subr.mxu0 0.0
  %204 = vmatpush1.msra.mxu0 0.0
  %205 = vmatprep.subr.mxu0 0.0
  %206 = vmatpush1.msra.mxu0 0.0
  %207 = vmatprep.subr.mxu0 0.0
  %208 = vmatpush1.msra.mxu0 0.0
  %209 = vmatprep.subr.mxu0 0.0
  %210 = vmatpush1.msra.mxu0 0.0
  %211 = vmatprep.subr.mxu0 0.0
  %212 = vmatpush1.msra.mxu0 0.0
  %213 = vmatprep.mubr.f32.mxu0 0.0
  %214 = vmatmul.mubr.f32.gmra.mrb[0].mxu0 %v144
  %v215 = vpop.f32.mrb[0].mxu0
  %v216 = vadd.f32 %v140, %v215
  %v217 = vpop.f32.mrb[0].mxu0
  %218 = vmatprep.mubr.f32.mxu0 0.0
  %219 = vmatmul.mubr.f32.gmra.mrb[0].mxu0 %v147
  %v220 = vpop.f32.mrb[0].mxu0
  %v221 = vadd.f32 %v140, %v220
  %v222 = vpop.f32.mrb[0].mxu0
  %223 = vdwg.mxu0
  %vm224 = vcmp.gt.f32.partialorder %v216, 0.0
  %vm225 = vcmp.gt.f32.partialorder %v221, 0.0
  %v226 = vmul.f32 %v216, 0.01
  %v227 = vmul.f32 %v221, 0.01
  %v228 = vsel %vm224, %v216, %v226
  %v229 = vsel %vm225, %v221, %v227
  %v230 = vld [vmem:[%s5] sm:$0xff]
  %v231 = vld [vmem:[%s5 + $0x8] sm:$0xff]
  %v232 = vld [vmem:[%s5 + $0x10] sm:$0xff]
  %v233 = vld [vmem:[%s5 + $0x18] sm:$0xff]
  %v234 = vld [vmem:[%s6] sm:$0x1]
  %v236 = vlaneseq
  %v237 = vshrl.u32 %v236, 7
  %v238 = vsub.s32 0, %v237
  %v239 = vrot.slane %v234, %v238
  %v242 = vsel %vm39, %v228, 0
  %v245 = vsel %vm39, %v229, 0
  %247 = vmatprep.subr.mxu0 0.0
  %248 = vmatpush1.msra.mxu0 %v230
  %249 = vmatprep.subr.mxu0 0.0
  %250 = vmatpush1.msra.mxu0 %v231
  %251 = vmatprep.subr.mxu0 0.0
  %252 = vmatpush1.msra.mxu0 %v232
  %253 = vmatprep.subr.mxu0 0.0
  %254 = vmatpush1.msra.mxu0 %v233
  %255 = vmatprep.subr.mxu0 0.0
  %256 = vmatpush1.msra.mxu0 0.0
  %257 = vmatprep.subr.mxu0 0.0
  %258 = vmatpush1.msra.mxu0 0.0
  %259 = vmatprep.subr.mxu0 0.0
  %260 = vmatpush1.msra.mxu0 0.0
  %261 = vmatprep.subr.mxu0 0.0
  %262 = vmatpush1.msra.mxu0 0.0
  %263 = vmatprep.subr.mxu0 0.0
  %264 = vmatpush1.msra.mxu0 0.0
  %265 = vmatprep.subr.mxu0 0.0
  %266 = vmatpush1.msra.mxu0 0.0
  %267 = vmatprep.subr.mxu0 0.0
  %268 = vmatpush1.msra.mxu0 0.0
  %269 = vmatprep.subr.mxu0 0.0
  %270 = vmatpush1.msra.mxu0 0.0
  %271 = vmatprep.subr.mxu0 0.0
  %272 = vmatpush1.msra.mxu0 0.0
  %273 = vmatprep.subr.mxu0 0.0
  %274 = vmatpush1.msra.mxu0 0.0
  %275 = vmatprep.subr.mxu0 0.0
  %276 = vmatpush1.msra.mxu0 0.0
  %277 = vmatprep.subr.mxu0 0.0
  %278 = vmatpush1.msra.mxu0 0.0
  %279 = vmatprep.subr.mxu0 0.0
  %280 = vmatpush1.msra.mxu0 0.0
  %281 = vmatprep.subr.mxu0 0.0
  %282 = vmatpush1.msra.mxu0 0.0
  %283 = vmatprep.subr.mxu0 0.0
  %284 = vmatpush1.msra.mxu0 0.0
  %285 = vmatprep.subr.mxu0 0.0
  %286 = vmatpush1.msra.mxu0 0.0
  %287 = vmatprep.subr.mxu0 0.0
  %288 = vmatpush1.msra.mxu0 0.0
  %289 = vmatprep.subr.mxu0 0.0
  %290 = vmatpush1.msra.mxu0 0.0
  %291 = vmatprep.subr.mxu0 0.0
  %292 = vmatpush1.msra.mxu0 0.0
  %293 = vmatprep.subr.mxu0 0.0
  %294 = vmatpush1.msra.mxu0 0.0
  %295 = vmatprep.subr.mxu0 0.0
  %296 = vmatpush1.msra.mxu0 0.0
  %297 = vmatprep.subr.mxu0 0.0
  %298 = vmatpush1.msra.mxu0 0.0
  %299 = vmatprep.subr.mxu0 0.0
  %300 = vmatpush1.msra.mxu0 0.0
  %301 = vmatprep.subr.mxu0 0.0
  %302 = vmatpush1.msra.mxu0 0.0
  %303 = vmatprep.subr.mxu0 0.0
  %304 = vmatpush1.msra.mxu0 0.0
  %305 = vmatprep.subr.mxu0 0.0
  %306 = vmatpush1.msra.mxu0 0.0
  %307 = vmatprep.subr.mxu0 0.0
  %308 = vmatpush1.msra.mxu0 0.0
  %309 = vmatprep.subr.mxu0 0.0
  %310 = vmatpush1.msra.mxu0 0.0
  %311 = vmatprep.mubr.f32.mxu0 0.0
  %312 = vmatmul.mubr.f32.gmra.mrb[0].mxu0 %v242
  %v313 = vpop.f32.mrb[0].mxu0
  %v314 = vadd.f32 %v239, %v313
  %v315 = vpop.f32.mrb[0].mxu0
  %316 = vmatprep.mubr.f32.mxu0 0.0
  %317 = vmatmul.mubr.f32.gmra.mrb[0].mxu0 %v245
  %v318 = vpop.f32.mrb[0].mxu0
  %v319 = vadd.f32 %v239, %v318
  %v320 = vpop.f32.mrb[0].mxu0
  %321 = vdwg.mxu0
  %vm322 = vcmask 64512
  %323 = vst.msk [vmem:[%s7] sm:$0xff] %vm322, %v314
  %324 = vst.msk [vmem:[%s7 + $0x8] sm:$0xff] %vm322, %v319
  // Predicated region
  $region30: #{tpu_custom_call.1} parent=0 // pred_check
    _
  $region31: #{tpu_custom_call.1} parent=0 // pred_check_branch
    %326 = sbr.rel (0) target = $region33
  $region32: #{tpu_custom_call.1} parent=0 // pred_region
    _
  $region33: #{tpu_custom_call.1} parent=0 // pred_fallthru
    _
  // Predicated region
  $region34: #{tpu_custom_call.1} parent=0 // pred_check
    _
  $region35: #{tpu_custom_call.1} parent=0 // pred_check_branch
    %328 = sbr.rel (0) target = $region37
  $region36: #{tpu_custom_call.1} parent=0 // pred_region
    _
  $region37: #{tpu_custom_call.1} parent=0 // pred_fallthru
    _

</llo_original>
